<compile_context>
chip_gen: v6e
topology: v6e:2x2x1
jax: 0.10.0
libtpu: 0.0.40
codegen_flags: <defaults>
</compile_context>

<pallas_src>
import jax
import jax.numpy as jnp
from jax.experimental import pallas as pl
from jax.experimental.pallas import tpu as pltpu  # noqa: F401  (imported per convention)

# ----------------------------- problem sizes -----------------------------
B = 2            # query batch
CIN = 4          # input channels
H = W = 16       # spatial
COUT = 32        # backbone.num_features
WAYS = 5         # number of classes / prototypes
SHOTS = 1        # unused by forward()
KH = KW = 3
KDIM = KH * KW * CIN + 1     # 36 im2col channels + 1 folded-bias ones column


# ----------------------- fused forward Pallas kernel -----------------------
def fused_kernel(patch_ref, w_ref, pool_ref, proto_ref, out_ref):
    # patch_ref : (B*H*W, KDIM)  im2col slab, last column == 1.0 (bias fold)
    # w_ref     : (KDIM, COUT)   packed conv weights, last row == bias
    # pool_ref  : (B, B*H*W)     block-diagonal 1/(H*W) mean-pool matrix
    # proto_ref : (WAYS, COUT)   prototypes (self.weight)
    # out_ref   : (B, WAYS)      cosine logits
    # conv3x3 + bias as a single MXU matmul
    acc = jnp.dot(patch_ref[...], w_ref[...], preferred_element_type=jnp.float32)
    acc = jnp.maximum(acc, 0.0)                                     # ReLU
    # global average pool on the MXU (keeps XLU/VPU free)
    feat = jnp.dot(pool_ref[...], acc, preferred_element_type=jnp.float32)   # (B, COUT)
    protos = proto_ref[...]
    # F.normalize(x, dim=1): x / max(||x||, 1e-12) == x * rsqrt(max(||x||^2, 1e-24))
    q_inv = jax.lax.rsqrt(
        jnp.maximum(jnp.sum(feat * feat, axis=1, keepdims=True), 1e-24))
    p_inv = jax.lax.rsqrt(
        jnp.maximum(jnp.sum(protos * protos, axis=1, keepdims=True), 1e-24))
    qn = feat * q_inv
    pn = protos * p_inv
    # cosine logits = qn @ pn.T (contract feature dims directly; no transpose op)
    out_ref[...] = jax.lax.dot_general(
        qn, pn, (((1,), (1,)), ((), ())), preferred_element_type=jnp.float32)


# --------------------- one-time parameter repacking ---------------------
def pack_params(conv_w_oihw, conv_b, prototypes):
    """Hoisted out of forward(): done once at parameter-setup time."""
    w_hwio = jnp.transpose(conv_w_oihw, (2, 3, 1, 0))                    # (3,3,CIN,COUT)
    w_mat = w_hwio.reshape(KH * KW * CIN, COUT)                          # (36, COUT), (ky,kx,cin) order
    w_packed = jnp.concatenate([w_mat, conv_b.reshape(1, COUT)], axis=0)  # (37, COUT), last row = bias
    img_of_col = jnp.arange(B * H * W, dtype=jnp.int32) // (H * W)
    pool_mat = (jnp.arange(B, dtype=jnp.int32)[:, None] == img_of_col[None, :]
                ).astype(jnp.float32) * (1.0 / (H * W))                  # (B, B*H*W)
    return w_packed, pool_mat, jnp.asarray(prototypes, jnp.float32)


# ------------------------------ full forward ------------------------------
@jax.jit
def prototypical_forward(x_nchw, w_packed, pool_mat, prototypes):
    # neck is empty (dropout=False, using_insightface=False) -> identity.
    # Layout prep (one small XLA fusion feeding the kernel): NCHW -> NHWC,
    # 'same' zero pad, im2col pack so the kernel sees a lane-dense 2-D slab.
    x_nhwc = jnp.transpose(x_nchw, (0, 2, 3, 1))
    x_pad = jnp.pad(x_nhwc, ((0, 0), (1, 1), (1, 1), (0, 0)))
    taps = [x_pad[:, dy:dy + H, dx:dx + W, :]
            for dy in range(KH) for dx in range(KW)]
    patch = jnp.concatenate(taps, axis=-1).reshape(B * H * W, KH * KW * CIN)  # (512, 36)
    ones_col = jnp.ones((B * H * W, 1), jnp.float32)                          # bias-fold column
    patch = jnp.concatenate([patch, ones_col], axis=-1)                       # (512, 37)
    return pl.pallas_call(
        fused_kernel,
        out_shape=jax.ShapeDtypeStruct((B, WAYS), jnp.float32),
    )(patch, w_packed, pool_mat, prototypes)


# ------------------------------ JAX reference ------------------------------
def reference_forward(x_nchw, conv_w_oihw, conv_b, prototypes):
    y = jax.lax.conv_general_dilated(
        x_nchw, conv_w_oihw, window_strides=(1, 1), padding="SAME",
        dimension_numbers=("NCHW", "OIHW", "NCHW"))
    y = y + conv_b[None, :, None, None]
    y = jnp.maximum(y, 0.0)
    feat = jnp.mean(y, axis=(2, 3))
    qn = feat / jnp.maximum(
        jnp.linalg.norm(feat, axis=1, keepdims=True), 1e-12)
    pn = prototypes / jnp.maximum(
        jnp.linalg.norm(prototypes, axis=1, keepdims=True), 1e-12)
    return qn @ pn.T


if __name__ == "__main__":
    key = jax.random.PRNGKey(0)
    k_x, k_w, k_b, k_p = jax.random.split(key, 4)

    # Inputs / deterministic parameters (synthetic, no checkpoint load).
    x = jax.random.normal(k_x, (B, CIN, H, W), dtype=jnp.float32)          # NCHW like PyTorch
    conv_w = jax.random.normal(k_w, (COUT, CIN, 3, 3), dtype=jnp.float32) * 0.1
    conv_b = jax.random.normal(k_b, (COUT,), dtype=jnp.float32) * 0.1
    prototypes = jax.random.normal(k_p, (WAYS, COUT), dtype=jnp.float32)   # self.weight

    # One-time parameter packing (hoisted out of the forward path).
    w_packed, pool_mat, protos = pack_params(conv_w, conv_b, prototypes)

    logits = jax.block_until_ready(
        prototypical_forward(x, w_packed, pool_mat, protos))
    ref = reference_forward(x, conv_w, conv_b, prototypes)

    assert logits.shape == (B, WAYS), logits.shape
    assert jnp.allclose(logits, ref, rtol=1e-4, atol=1e-4), (
        f"max abs err = {jnp.max(jnp.abs(logits - ref))}")
    print("KERNEL_OK")
</pallas_src>

<mosaic_0001>
module attributes {stable_mosaic.version = 11 : i64} {
  func.func @fused_kernel(%arg0: memref<512x37xf32, #tpu.memory_space<vmem>>, %arg1: memref<37x32xf32, #tpu.memory_space<vmem>>, %arg2: memref<2x512xf32, #tpu.memory_space<vmem>>, %arg3: memref<5x32xf32, #tpu.memory_space<vmem>>, %arg4: memref<2x5xf32, #tpu.memory_space<vmem>>) attributes {dimension_semantics = [], scalar_prefetch = 0 : i64, scratch_operands = 0 : i64, tpu.core_type = #tpu.core_type<tc>} {
    %c0 = arith.constant 0 : index
    %c0_0 = arith.constant 0 : index
    %0 = vector.load %arg0[%c0, %c0_0] : memref<512x37xf32, #tpu.memory_space<vmem>>, vector<512x37xf32>
    %c0_1 = arith.constant 0 : index
    %c0_2 = arith.constant 0 : index
    %1 = vector.load %arg1[%c0_1, %c0_2] : memref<37x32xf32, #tpu.memory_space<vmem>>, vector<37x32xf32>
    %cst = arith.constant dense<0.000000e+00> : vector<512x32xf32>
    %2 = tpu.matmul %0, %1, %cst {dimension_numbers = #tpu.dot_dimension_numbers<[1], [0], [0], [1], [0, 0, 1, 1], [], []>} : vector<512x37xf32>, vector<37x32xf32>, vector<512x32xf32> -> vector<512x32xf32>
    %cst_3 = arith.constant 0.000000e+00 : f32
    %3 = vector.broadcast %cst_3 : f32 to vector<512x32xf32>
    %4 = arith.maximumf %2, %3 : vector<512x32xf32>
    %c0_4 = arith.constant 0 : index
    %c0_5 = arith.constant 0 : index
    %5 = vector.load %arg2[%c0_4, %c0_5] : memref<2x512xf32, #tpu.memory_space<vmem>>, vector<2x512xf32>
    %cst_6 = arith.constant dense<0.000000e+00> : vector<2x32xf32>
    %6 = tpu.matmul %5, %4, %cst_6 {dimension_numbers = #tpu.dot_dimension_numbers<[1], [0], [0], [1], [0, 0, 1, 1], [], []>} : vector<2x512xf32>, vector<512x32xf32>, vector<2x32xf32> -> vector<2x32xf32>
    %c0_7 = arith.constant 0 : index
    %c0_8 = arith.constant 0 : index
    %7 = vector.load %arg3[%c0_7, %c0_8] : memref<5x32xf32, #tpu.memory_space<vmem>>, vector<5x32xf32>
    %8 = arith.mulf %6, %6 : vector<2x32xf32>
    %cst_9 = arith.constant dense<0.000000e+00> : vector<2xf32>
    %9 = vector.multi_reduction <add>, %8, %cst_9 [1] : vector<2x32xf32> to vector<2xf32>
    %10 = vector.shape_cast %9 : vector<2xf32> to vector<2x1xf32>
    %cst_10 = arith.constant 1.000000e-24 : f32
    %11 = vector.broadcast %cst_10 : f32 to vector<2x1xf32>
    %12 = arith.maximumf %10, %11 : vector<2x1xf32>
    %13 = math.rsqrt %12 : vector<2x1xf32>
    %14 = arith.mulf %7, %7 : vector<5x32xf32>
    %cst_11 = arith.constant dense<0.000000e+00> : vector<5xf32>
    %15 = vector.multi_reduction <add>, %14, %cst_11 [1] : vector<5x32xf32> to vector<5xf32>
    %16 = vector.shape_cast %15 : vector<5xf32> to vector<5x1xf32>
    %cst_12 = arith.constant 1.000000e-24 : f32
    %17 = vector.broadcast %cst_12 : f32 to vector<5x1xf32>
    %18 = arith.maximumf %16, %17 : vector<5x1xf32>
    %19 = math.rsqrt %18 : vector<5x1xf32>
    %20 = vector.broadcast %13 : vector<2x1xf32> to vector<2x32xf32>
    %21 = arith.mulf %6, %20 : vector<2x32xf32>
    %22 = vector.broadcast %19 : vector<5x1xf32> to vector<5x32xf32>
    %23 = arith.mulf %7, %22 : vector<5x32xf32>
    %cst_13 = arith.constant dense<0.000000e+00> : vector<2x5xf32>
    %24 = tpu.matmul %21, %23, %cst_13 {dimension_numbers = #tpu.dot_dimension_numbers<[1], [1], [0], [0], [0, 0, 1, 0], [], []>} : vector<2x32xf32>, vector<5x32xf32>, vector<2x5xf32> -> vector<2x5xf32>
    %c0_14 = arith.constant 0 : index
    %c0_15 = arith.constant 0 : index
    %25 = vector.load %arg4[%c0_14, %c0_15] : memref<2x5xf32, #tpu.memory_space<vmem>>, vector<2x5xf32>
    tpu.vector_store %arg4[%c0_14, %c0_15], %24 {strides = array<i32>} : memref<2x5xf32, #tpu.memory_space<vmem>>, vector<2x5xf32>,
    return
  }
}

</mosaic_0001>

<llo_original>
// kernel: prototypical_forward.1
$region0: #{prototypical_forward.1}
  #allocation0 [shape = 'u32[]', space=smem, size = 0x4, offset = 0x4, fixed_abs, tag = 'smem constant byte address 0x4 - core index']
  #allocation1 [shape = 'u32[144,128]{1,0:T(1,128)}', space=vmem, size = 0x12000, scoped, tag = 'internal scratch']
  %s0 = inlined_call_operand.vmem [shape: f32[512,37], index: 0, kind: input, shape index: {}]
  %s1 = inlined_call_operand.vmem [shape: f32[37,32], index: 1, kind: input, shape index: {}]
  %s2 = inlined_call_operand.vmem [shape: f32[2,512], index: 2, kind: input, shape index: {}]
  %s3 = inlined_call_operand.vmem [shape: f32[5,32], index: 3, kind: input, shape index: {}]
  %s4 = inlined_call_operand.hbm [shape: f32[2,5], index: 4, kind: output, shape index: {}]
  %s5 = sld [smem:[#allocation0]]
  $region26: #{prototypical_forward.1} parent=0
    _
  %s7 = ssub.s32 1, %s5
  %s8 = scalar_select 0, %s7, %s5
  $region1: #{prototypical_forward.1} parent=0
    #allocation2 [shape = 'u8[1024]{0}', space=vmem, size = 0x400, scoped, tag = 'output window, operand 0, single buffered']
    #allocation3 [shape = 's32[1]{0}', space=sflag, size = 0x4, scoped, tag = 'scoped memory for prototypical_forward.1']
    %9 = vsyncpa [#allocation3], 0
    // Predicated region
    $region2: #{prototypical_forward.1} parent=1 // pred_check
      _
    $region3: #{prototypical_forward.1} parent=1 // pred_check_branch
      %11 = sbr.rel (0) target = $region5
    $region4: #{prototypical_forward.1} parent=1 // pred_region
      _
    $region5: #{prototypical_forward.1} parent=1 // pred_fallthru
      _
    // Predicated region
    $region6: #{prototypical_forward.1} parent=1 // pred_check
      _
    $region7: #{prototypical_forward.1} parent=1 // pred_check_branch
      %13 = sbr.rel (0) target = $region9
    $region8: #{prototypical_forward.1} parent=1 // pred_region
      _
    $region9: #{prototypical_forward.1} parent=1 // pred_fallthru
      _
    // Predicated region
    $region10: #{prototypical_forward.1} parent=1 // pred_check
      _
    $region11: #{prototypical_forward.1} parent=1 // pred_check_branch
      %15 = sbr.rel (0) target = $region13
    $region12: #{prototypical_forward.1} parent=1 // pred_region
      _
    $region13: #{prototypical_forward.1} parent=1 // pred_fallthru
      _
    // Predicated region
    $region14: #{prototypical_forward.1} parent=1 // pred_check
      _
    $region15: #{prototypical_forward.1} parent=1 // pred_check_branch
      %17 = sbr.rel (0) target = $region17
    $region16: #{prototypical_forward.1} parent=1 // pred_region
      _
    $region17: #{prototypical_forward.1} parent=1 // pred_fallthru
      _
    %v18 = vld [vmem:[%s0] sm:$0xff]
    %v19 = vld [vmem:[%s0 + $0x8] sm:$0xff]
    %v20 = vld [vmem:[%s0 + $0x10] sm:$0xff]
    %v21 = vld [vmem:[%s0 + $0x18] sm:$0xff]
    %v22 = vld [vmem:[%s0 + $0x20] sm:$0xff]
    %v23 = vld [vmem:[%s0 + $0x28] sm:$0xff]
    %v24 = vld [vmem:[%s0 + $0x30] sm:$0xff]
    %v25 = vld [vmem:[%s0 + $0x38] sm:$0xff]
    %v26 = vld [vmem:[%s0 + $0x40] sm:$0xff]
    %v27 = vld [vmem:[%s0 + $0x48] sm:$0xff]
    %v28 = vld [vmem:[%s0 + $0x50] sm:$0xff]
    %v29 = vld [vmem:[%s0 + $0x58] sm:$0xff]
    %v30 = vld [vmem:[%s0 + $0x60] sm:$0xff]
    %v31 = vld [vmem:[%s0 + $0x68] sm:$0xff]
    %v32 = vld [vmem:[%s0 + $0x70] sm:$0xff]
    %v33 = vld [vmem:[%s0 + $0x78] sm:$0xff]
    %v34 = vld [vmem:[%s0 + $0x80] sm:$0xff]
    %v35 = vld [vmem:[%s0 + $0x88] sm:$0xff]
    %v36 = vld [vmem:[%s0 + $0x90] sm:$0xff]
    %v37 = vld [vmem:[%s0 + $0x98] sm:$0xff]
    %v38 = vld [vmem:[%s0 + $0xa0] sm:$0xff]
    %v39 = vld [vmem:[%s0 + $0xa8] sm:$0xff]
    %v40 = vld [vmem:[%s0 + $0xb0] sm:$0xff]
    %v41 = vld [vmem:[%s0 + $0xb8] sm:$0xff]
    %v42 = vld [vmem:[%s0 + $0xc0] sm:$0xff]
    %v43 = vld [vmem:[%s0 + $0xc8] sm:$0xff]
    %v44 = vld [vmem:[%s0 + $0xd0] sm:$0xff]
    %v45 = vld [vmem:[%s0 + $0xd8] sm:$0xff]
    %v46 = vld [vmem:[%s0 + $0xe0] sm:$0xff]
    %v47 = vld [vmem:[%s0 + $0xe8] sm:$0xff]
    %v48 = vld [vmem:[%s0 + $0xf0] sm:$0xff]
    %v49 = vld [vmem:[%s0 + $0xf8] sm:$0xff]
    %v50 = vld [vmem:[%s0 + $0x100] sm:$0xff]
    %v51 = vld [vmem:[%s0 + $0x108] sm:$0xff]
    %v52 = vld [vmem:[%s0 + $0x110] sm:$0xff]
    %v53 = vld [vmem:[%s0 + $0x118] sm:$0xff]
    %v54 = vld [vmem:[%s0 + $0x120] sm:$0xff]
    %v55 = vld [vmem:[%s0 + $0x128] sm:$0xff]
    %v56 = vld [vmem:[%s0 + $0x130] sm:$0xff]
    %v57 = vld [vmem:[%s0 + $0x138] sm:$0xff]
    %v58 = vld [vmem:[%s0 + $0x140] sm:$0xff]
    %v59 = vld [vmem:[%s0 + $0x148] sm:$0xff]
    %v60 = vld [vmem:[%s0 + $0x150] sm:$0xff]
    %v61 = vld [vmem:[%s0 + $0x158] sm:$0xff]
    %v62 = vld [vmem:[%s0 + $0x160] sm:$0xff]
    %v63 = vld [vmem:[%s0 + $0x168] sm:$0xff]
    %v64 = vld [vmem:[%s0 + $0x170] sm:$0xff]
    %v65 = vld [vmem:[%s0 + $0x178] sm:$0xff]
    %v66 = vld [vmem:[%s0 + $0x180] sm:$0xff]
    %v67 = vld [vmem:[%s0 + $0x188] sm:$0xff]
    %v68 = vld [vmem:[%s0 + $0x190] sm:$0xff]
    %v69 = vld [vmem:[%s0 + $0x198] sm:$0xff]
    %v70 = vld [vmem:[%s0 + $0x1a0] sm:$0xff]
    %v71 = vld [vmem:[%s0 + $0x1a8] sm:$0xff]
    %v72 = vld [vmem:[%s0 + $0x1b0] sm:$0xff]
    %v73 = vld [vmem:[%s0 + $0x1b8] sm:$0xff]
    %v74 = vld [vmem:[%s0 + $0x1c0] sm:$0xff]
    %v75 = vld [vmem:[%s0 + $0x1c8] sm:$0xff]
    %v76 = vld [vmem:[%s0 + $0x1d0] sm:$0xff]
    %v77 = vld [vmem:[%s0 + $0x1d8] sm:$0xff]
    %v78 = vld [vmem:[%s0 + $0x1e0] sm:$0xff]
    %v79 = vld [vmem:[%s0 + $0x1e8] sm:$0xff]
    %v80 = vld [vmem:[%s0 + $0x1f0] sm:$0xff]
    %v81 = vld [vmem:[%s0 + $0x1f8] sm:$0xff]
    %v82 = vld [vmem:[%s1] sm:$0xff]
    %v83 = vld [vmem:[%s1 + $0x8] sm:$0xff]
    %v84 = vld [vmem:[%s1 + $0x10] sm:$0xff]
    %v85 = vld [vmem:[%s1 + $0x18] sm:$0xff]
    %v86 = vld [vmem:[%s1 + $0x20] sm:$0x1f]
    %vm87 = vcmask 302080
    %v89 = vsel %vm87, %v18, 0
    %v92 = vsel %vm87, %v19, 0
    %v95 = vsel %vm87, %v20, 0
    %v98 = vsel %vm87, %v21, 0
    %v101 = vsel %vm87, %v22, 0
    %v104 = vsel %vm87, %v23, 0
    %v107 = vsel %vm87, %v24, 0
    %v110 = vsel %vm87, %v25, 0
    %v113 = vsel %vm87, %v26, 0
    %v116 = vsel %vm87, %v27, 0
    %v119 = vsel %vm87, %v28, 0
    %v122 = vsel %vm87, %v29, 0
    %v125 = vsel %vm87, %v30, 0
    %v128 = vsel %vm87, %v31, 0
    %v131 = vsel %vm87, %v32, 0
    %v134 = vsel %vm87, %v33, 0
    %v137 = vsel %vm87, %v34, 0
    %v140 = vsel %vm87, %v35, 0
    %v143 = vsel %vm87, %v36, 0
    %v146 = vsel %vm87, %v37, 0
    %v149 = vsel %vm87, %v38, 0
    %v152 = vsel %vm87, %v39, 0
    %v155 = vsel %vm87, %v40, 0
    %v158 = vsel %vm87, %v41, 0
    %v161 = vsel %vm87, %v42, 0
    %v164 = vsel %vm87, %v43, 0
    %v167 = vsel %vm87, %v44, 0
    %v170 = vsel %vm87, %v45, 0
    %v173 = vsel %vm87, %v46, 0
    %v176 = vsel %vm87, %v47, 0
    %v179 = vsel %vm87, %v48, 0
    %v182 = vsel %vm87, %v49, 0
    %v185 = vsel %vm87, %v50, 0
    %v188 = vsel %vm87, %v51, 0
    %v191 = vsel %vm87, %v52, 0
    %v194 = vsel %vm87, %v53, 0
    %v197 = vsel %vm87, %v54, 0
    %v200 = vsel %vm87, %v55, 0
    %v203 = vsel %vm87, %v56, 0
    %v206 = vsel %vm87, %v57, 0
    %v209 = vsel %vm87, %v58, 0
    %v212 = vsel %vm87, %v59, 0
    %v215 = vsel %vm87, %v60, 0
    %v218 = vsel %vm87, %v61, 0
    %v221 = vsel %vm87, %v62, 0
    %v224 = vsel %vm87, %v63, 0
    %v227 = vsel %vm87, %v64, 0
    %v230 = vsel %vm87, %v65, 0
    %v233 = vsel %vm87, %v66, 0
    %v236 = vsel %vm87, %v67, 0
    %v239 = vsel %vm87, %v68, 0
    %v242 = vsel %vm87, %v69, 0
    %v245 = vsel %vm87, %v70, 0
    %v248 = vsel %vm87, %v71, 0
    %v251 = vsel %vm87, %v72, 0
    %v254 = vsel %vm87, %v73, 0
    %v257 = vsel %vm87, %v74, 0
    %v260 = vsel %vm87, %v75, 0
    %v263 = vsel %vm87, %v76, 0
    %v266 = vsel %vm87, %v77, 0
    %v269 = vsel %vm87, %v78, 0
    %v272 = vsel %vm87, %v79, 0
    %v275 = vsel %vm87, %v80, 0
    %v278 = vsel %vm87, %v81, 0
    %vm280 = vcmask 1044480
    %v282 = vsel %vm280, %v86, 0
    %284 = vmatprep.subr.mxu0 0.0
    %285 = vmatpush1.msra.mxu0 0.0
    %286 = vmatprep.subr.mxu0 0.0
    %287 = vmatpush1.msra.mxu0 0.0
    %288 = vmatprep.subr.mxu0 0.0
    %289 = vmatpush1.msra.mxu0 0.0
    %290 = vmatprep.subr.mxu0 0.0
    %291 = vmatpush1.msra.mxu0 0.0
    %292 = vmatprep.subr.mxu0 0.0
    %293 = vmatpush1.msra.mxu0 0.0
    %294 = vmatprep.subr.mxu0 0.0
    %295 = vmatpush1.msra.mxu0 0.0
    %296 = vmatprep.subr.mxu0 0.0
    %297 = vmatpush1.msra.mxu0 0.0
    %298 = vmatprep.subr.mxu0 0.0
    %299 = vmatpush1.msra.mxu0 0.0
    %300 = vmatprep.subr.mxu0 0.0
    %301 = vmatpush1.msra.mxu0 0.0
    %302 = vmatprep.subr.mxu0 0.0
    %303 = vmatpush1.msra.mxu0 0.0
    %304 = vmatprep.subr.mxu0 0.0
    %305 = vmatpush1.msra.mxu0 0.0
    %306 = vmatprep.subr.mxu0 0.0
    %307 = vmatpush1.msra.mxu0 %v282
    %308 = vmatprep.subr.mxu0 0.0
    %309 = vmatpush1.msra.mxu0 %v85
    %310 = vmatprep.subr.mxu0 0.0
    %311 = vmatpush1.msra.mxu0 %v84
    %312 = vmatprep.subr.mxu0 0.0
    %313 = vmatpush1.msra.mxu0 %v83
    %314 = vmatprep.subr.mxu0 0.0
    %315 = vmatpush1.msra.mxu0 %v82
    %316 = vmatprep.subr.mxu0 0.0
    %317 = vmatpush2.msra.mxu0 0.0
    %318 = vmatprep.subr.mxu0 0.0
    %319 = vmatpush2.msra.mxu0 0.0
    %320 = vmatprep.subr.mxu0 0.0
    %321 = vmatpush2.msra.mxu0 0.0
    %322 = vmatprep.subr.mxu0 0.0
    %323 = vmatpush2.msra.mxu0 0.0
    %324 = vmatprep.subr.mxu0 0.0
    %325 = vmatpush2.msra.mxu0 0.0
    %326 = vmatprep.subr.mxu0 0.0
    %327 = vmatpush2.msra.mxu0 0.0
    %328 = vmatprep.subr.mxu0 0.0
    %329 = vmatpush2.msra.mxu0 0.0
    %330 = vmatprep.subr.mxu0 0.0
    %331 = vmatpush2.msra.mxu0 0.0
    %332 = vmatprep.subr.mxu0 0.0
    %333 = vmatpush2.msra.mxu0 0.0
    %334 = vmatprep.subr.mxu0 0.0
    %335 = vmatpush2.msra.mxu0 0.0
    %336 = vmatprep.subr.mxu0 0.0
    %337 = vmatpush2.msra.mxu0 0.0
    %338 = vmatprep.subr.mxu0 0.0
    %339 = vmatpush2.msra.mxu0 0.0
    %340 = vmatprep.subr.mxu0 0.0
    %341 = vmatpush2.msra.mxu0 0.0
    %342 = vmatprep.subr.mxu0 0.0
    %343 = vmatpush2.msra.mxu0 0.0
    %344 = vmatprep.subr.mxu0 0.0
    %345 = vmatpush2.msra.mxu0 0.0
    %346 = vmatprep.subr.mxu0 0.0
    %347 = vmatpush2.msra.mxu0 0.0
    %348 = vmatprep.mubr.f32.mxu0 0.0
    %349 = vmatmul.mubr.f32.gmra.mxu0 %v89
    %v350 = vpop.f32.mrf.mxu0
    %v351 = vadd.f32 0.0, %v350
    %v352 = vpop.f32.mrf.mxu0
    %353 = vmatprep.mubr.f32.mxu0 0.0
    %354 = vmatmul.mubr.f32.gmra.mxu0 %v92
    %v355 = vpop.f32.mrf.mxu0
    %v356 = vadd.f32 0.0, %v355
    %v357 = vpop.f32.mrf.mxu0
    %358 = vmatprep.mubr.f32.mxu0 0.0
    %359 = vmatmul.mubr.f32.gmra.mxu0 %v95
    %v360 = vpop.f32.mrf.mxu0
    %v361 = vadd.f32 0.0, %v360
    %v362 = vpop.f32.mrf.mxu0
    %363 = vmatprep.mubr.f32.mxu0 0.0
    %364 = vmatmul.mubr.f32.gmra.mxu0 %v98
    %v365 = vpop.f32.mrf.mxu0
    %v366 = vadd.f32 0.0, %v365
    %v367 = vpop.f32.mrf.mxu0
    %368 = vmatprep.mubr.f32.mxu0 0.0
    %369 = vmatmul.mubr.f32.gmra.mxu0 %v101
    %v370 = vpop.f32.mrf.mxu0
    %v371 = vadd.f32 0.0, %v370
    %v372 = vpop.f32.mrf.mxu0
    %373 = vmatprep.mubr.f32.mxu0 0.0
    %374 = vmatmul.mubr.f32.gmra.mxu0 %v104
    %v375 = vpop.f32.mrf.mxu0
    %v376 = vadd.f32 0.0, %v375
    %v377 = vpop.f32.mrf.mxu0
    %378 = vmatprep.mubr.f32.mxu0 0.0
    %379 = vmatmul.mubr.f32.gmra.mxu0 %v107
    %v380 = vpop.f32.mrf.mxu0
    %v381 = vadd.f32 0.0, %v380
    %v382 = vpop.f32.mrf.mxu0
    %383 = vmatprep.mubr.f32.mxu0 0.0
    %384 = vmatmul.mubr.f32.gmra.mxu0 %v110
    %v385 = vpop.f32.mrf.mxu0
    %v386 = vadd.f32 0.0, %v385
    %v387 = vpop.f32.mrf.mxu0
    %388 = vmatprep.mubr.f32.mxu0 0.0
    %389 = vmatmul.mubr.f32.gmra.mxu0 %v113
    %v390 = vpop.f32.mrf.mxu0
    %v391 = vadd.f32 0.0, %v390
    %v392 = vpop.f32.mrf.mxu0
    %393 = vmatprep.mubr.f32.mxu0 0.0
    %394 = vmatmul.mubr.f32.gmra.mxu0 %v116
    %v395 = vpop.f32.mrf.mxu0
    %v396 = vadd.f32 0.0, %v395
    %v397 = vpop.f32.mrf.mxu0
    %398 = vmatprep.mubr.f32.mxu0 0.0
    %399 = vmatmul.mubr.f32.gmra.mxu0 %v119
    %v400 = vpop.f32.mrf.mxu0
    %v401 = vadd.f32 0.0, %v400
    %v402 = vpop.f32.mrf.mxu0
    %403 = vmatprep.mubr.f32.mxu0 0.0
    %404 = vmatmul.mubr.f32.gmra.mxu0 %v122
    %v405 = vpop.f32.mrf.mxu0
    %v406 = vadd.f32 0.0, %v405
    %v407 = vpop.f32.mrf.mxu0
    %408 = vmatprep.mubr.f32.mxu0 0.0
    %409 = vmatmul.mubr.f32.gmra.mxu0 %v125
    %v410 = vpop.f32.mrf.mxu0
    %v411 = vadd.f32 0.0, %v410
    %v412 = vpop.f32.mrf.mxu0
    %413 = vmatprep.mubr.f32.mxu0 0.0
    %414 = vmatmul.mubr.f32.gmra.mxu0 %v128
    %v415 = vpop.f32.mrf.mxu0
    %v416 = vadd.f32 0.0, %v415
    %v417 = vpop.f32.mrf.mxu0
    %418 = vmatprep.mubr.f32.mxu0 0.0
    %419 = vmatmul.mubr.f32.gmra.mxu0 %v131
    %v420 = vpop.f32.mrf.mxu0
    %v421 = vadd.f32 0.0, %v420
    %v422 = vpop.f32.mrf.mxu0
    %423 = vmatprep.mubr.f32.mxu0 0.0
    %424 = vmatmul.mubr.f32.gmra.mxu0 %v134
    %v425 = vpop.f32.mrf.mxu0
    %v426 = vadd.f32 0.0, %v425
    %v427 = vpop.f32.mrf.mxu0
    %428 = vmatprep.mubr.f32.mxu0 0.0
    %429 = vmatmul.mubr.f32.gmra.mxu0 %v137
    %v430 = vpop.f32.mrf.mxu0
    %v431 = vadd.f32 0.0, %v430
    %v432 = vpop.f32.mrf.mxu0
    %433 = vmatprep.mubr.f32.mxu0 0.0
    %434 = vmatmul.mubr.f32.gmra.mxu0 %v140
    %v435 = vpop.f32.mrf.mxu0
    %v436 = vadd.f32 0.0, %v435
    %v437 = vpop.f32.mrf.mxu0
    %438 = vmatprep.mubr.f32.mxu0 0.0
    %439 = vmatmul.mubr.f32.gmra.mxu0 %v143
    %v440 = vpop.f32.mrf.mxu0
    %v441 = vadd.f32 0.0, %v440
    %v442 = vpop.f32.mrf.mxu0
    %443 = vmatprep.mubr.f32.mxu0 0.0
    %444 = vmatmul.mubr.f32.gmra.mxu0 %v146
    %v445 = vpop.f32.mrf.mxu0
    %v446 = vadd.f32 0.0, %v445
    %v447 = vpop.f32.mrf.mxu0
    %448 = vmatprep.mubr.f32.mxu0 0.0
    %449 = vmatmul.mubr.f32.gmra.mxu0 %v149
    %v450 = vpop.f32.mrf.mxu0
    %v451 = vadd.f32 0.0, %v450
    %v452 = vpop.f32.mrf.mxu0
    %453 = vmatprep.mubr.f32.mxu0 0.0
    %454 = vmatmul.mubr.f32.gmra.mxu0 %v152
    %v455 = vpop.f32.mrf.mxu0
    %v456 = vadd.f32 0.0, %v455
    %v457 = vpop.f32.mrf.mxu0
    %458 = vmatprep.mubr.f32.mxu0 0.0
    %459 = vmatmul.mubr.f32.gmra.mxu0 %v155
    %v460 = vpop.f32.mrf.mxu0
    %v461 = vadd.f32 0.0, %v460
    %v462 = vpop.f32.mrf.mxu0
    %463 = vmatprep.mubr.f32.mxu0 0.0
    %464 = vmatmul.mubr.f32.gmra.mxu0 %v158
    %v465 = vpop.f32.mrf.mxu0
    %v466 = vadd.f32 0.0, %v465
    %v467 = vpop.f32.mrf.mxu0
    %468 = vmatprep.mubr.f32.mxu0 0.0
    %469 = vmatmul.mubr.f32.gmra.mxu0 %v161
    %v470 = vpop.f32.mrf.mxu0
    %v471 = vadd.f32 0.0, %v470
    %v472 = vpop.f32.mrf.mxu0
    %473 = vmatprep.mubr.f32.mxu0 0.0
    %474 = vmatmul.mubr.f32.gmra.mxu0 %v164
    %v475 = vpop.f32.mrf.mxu0
    %v476 = vadd.f32 0.0, %v475
    %v477 = vpop.f32.mrf.mxu0
    %478 = vmatprep.mubr.f32.mxu0 0.0
    %479 = vmatmul.mubr.f32.gmra.mxu0 %v167
    %v480 = vpop.f32.mrf.mxu0
    %v481 = vadd.f32 0.0, %v480
    %v482 = vpop.f32.mrf.mxu0
    %483 = vmatprep.mubr.f32.mxu0 0.0
    %484 = vmatmul.mubr.f32.gmra.mxu0 %v170
    %v485 = vpop.f32.mrf.mxu0
    %v486 = vadd.f32 0.0, %v485
    %v487 = vpop.f32.mrf.mxu0
    %488 = vmatprep.mubr.f32.mxu0 0.0
    %489 = vmatmul.mubr.f32.gmra.mxu0 %v173
    %v490 = vpop.f32.mrf.mxu0
    %v491 = vadd.f32 0.0, %v490
    %v492 = vpop.f32.mrf.mxu0
    %493 = vmatprep.mubr.f32.mxu0 0.0
    %494 = vmatmul.mubr.f32.gmra.mxu0 %v176
    %v495 = vpop.f32.mrf.mxu0
    %v496 = vadd.f32 0.0, %v495
    %v497 = vpop.f32.mrf.mxu0
    %498 = vmatprep.mubr.f32.mxu0 0.0
    %499 = vmatmul.mubr.f32.gmra.mxu0 %v179
    %v500 = vpop.f32.mrf.mxu0
    %v501 = vadd.f32 0.0, %v500
    %v502 = vpop.f32.mrf.mxu0
    %503 = vmatprep.mubr.f32.mxu0 0.0
    %504 = vmatmul.mubr.f32.gmra.mxu0 %v182
    %v505 = vpop.f32.mrf.mxu0
    %v506 = vadd.f32 0.0, %v505
    %v507 = vpop.f32.mrf.mxu0
    %508 = vmatprep.mubr.f32.mxu0 0.0
    %509 = vmatmul.mubr.f32.gmra.mxu0 %v185
    %v510 = vpop.f32.mrf.mxu0
    %v511 = vadd.f32 0.0, %v510
    %v512 = vpop.f32.mrf.mxu0
    %513 = vmatprep.mubr.f32.mxu0 0.0
    %514 = vmatmul.mubr.f32.gmra.mxu0 %v188
    %v515 = vpop.f32.mrf.mxu0
    %v516 = vadd.f32 0.0, %v515
    %v517 = vpop.f32.mrf.mxu0
    %518 = vmatprep.mubr.f32.mxu0 0.0
    %519 = vmatmul.mubr.f32.gmra.mxu0 %v191
    %v520 = vpop.f32.mrf.mxu0
    %v521 = vadd.f32 0.0, %v520
    %v522 = vpop.f32.mrf.mxu0
    %523 = vmatprep.mubr.f32.mxu0 0.0
    %524 = vmatmul.mubr.f32.gmra.mxu0 %v194
    %v525 = vpop.f32.mrf.mxu0
    %v526 = vadd.f32 0.0, %v525
    %v527 = vpop.f32.mrf.mxu0
    %528 = vmatprep.mubr.f32.mxu0 0.0
    %529 = vmatmul.mubr.f32.gmra.mxu0 %v197
    %v530 = vpop.f32.mrf.mxu0
    %v531 = vadd.f32 0.0, %v530
    %v532 = vpop.f32.mrf.mxu0
    %533 = vmatprep.mubr.f32.mxu0 0.0
    %534 = vmatmul.mubr.f32.gmra.mxu0 %v200
    %v535 = vpop.f32.mrf.mxu0
    %v536 = vadd.f32 0.0, %v535
    %v537 = vpop.f32.mrf.mxu0
    %538 = vmatprep.mubr.f32.mxu0 0.0
    %539 = vmatmul.mubr.f32.gmra.mxu0 %v203
    %v540 = vpop.f32.mrf.mxu0
    %v541 = vadd.f32 0.0, %v540
    %v542 = vpop.f32.mrf.mxu0
    %543 = vmatprep.mubr.f32.mxu0 0.0
    %544 = vmatmul.mubr.f32.gmra.mxu0 %v206
    %v545 = vpop.f32.mrf.mxu0
    %v546 = vadd.f32 0.0, %v545
    %v547 = vpop.f32.mrf.mxu0
    %548 = vmatprep.mubr.f32.mxu0 0.0
    %549 = vmatmul.mubr.f32.gmra.mxu0 %v209
    %v550 = vpop.f32.mrf.mxu0
    %v551 = vadd.f32 0.0, %v550
    %v552 = vpop.f32.mrf.mxu0
    %553 = vmatprep.mubr.f32.mxu0 0.0
    %554 = vmatmul.mubr.f32.gmra.mxu0 %v212
    %v555 = vpop.f32.mrf.mxu0
    %v556 = vadd.f32 0.0, %v555
    %v557 = vpop.f32.mrf.mxu0
    %558 = vmatprep.mubr.f32.mxu0 0.0
    %559 = vmatmul.mubr.f32.gmra.mxu0 %v215
    %v560 = vpop.f32.mrf.mxu0
    %v561 = vadd.f32 0.0, %v560
    %v562 = vpop.f32.mrf.mxu0
    %563 = vmatprep.mubr.f32.mxu0 0.0
    %564 = vmatmul.mubr.f32.gmra.mxu0 %v218
    %v565 = vpop.f32.mrf.mxu0
    %v566 = vadd.f32 0.0, %v565
    %v567 = vpop.f32.mrf.mxu0
    %568 = vmatprep.mubr.f32.mxu0 0.0
    %569 = vmatmul.mubr.f32.gmra.mxu0 %v221
    %v570 = vpop.f32.mrf.mxu0
    %v571 = vadd.f32 0.0, %v570
    %v572 = vpop.f32.mrf.mxu0
    %573 = vmatprep.mubr.f32.mxu0 0.0
    %574 = vmatmul.mubr.f32.gmra.mxu0 %v224
    %v575 = vpop.f32.mrf.mxu0
    %v576 = vadd.f32 0.0, %v575
    %v577 = vpop.f32.mrf.mxu0
    %578 = vmatprep.mubr.f32.mxu0 0.0
    %579 = vmatmul.mubr.f32.gmra.mxu0 %v227
    %v580 = vpop.f32.mrf.mxu0
    %v581 = vadd.f32 0.0, %v580
    %v582 = vpop.f32.mrf.mxu0
    %583 = vmatprep.mubr.f32.mxu0 0.0
    %584 = vmatmul.mubr.f32.gmra.mxu0 %v230
    %v585 = vpop.f32.mrf.mxu0
    %v586 = vadd.f32 0.0, %v585
    %v587 = vpop.f32.mrf.mxu0
    %588 = vmatprep.mubr.f32.mxu0 0.0
    %589 = vmatmul.mubr.f32.gmra.mxu0 %v233
    %v590 = vpop.f32.mrf.mxu0
    %v591 = vadd.f32 0.0, %v590
    %v592 = vpop.f32.mrf.mxu0
    %593 = vmatprep.mubr.f32.mxu0 0.0
    %594 = vmatmul.mubr.f32.gmra.mxu0 %v236
    %v595 = vpop.f32.mrf.mxu0
    %v596 = vadd.f32 0.0, %v595
    %v597 = vpop.f32.mrf.mxu0
    %598 = vmatprep.mubr.f32.mxu0 0.0
    %599 = vmatmul.mubr.f32.gmra.mxu0 %v239
    %v600 = vpop.f32.mrf.mxu0
    %v601 = vadd.f32 0.0, %v600
    %v602 = vpop.f32.mrf.mxu0
    %603 = vmatprep.mubr.f32.mxu0 0.0
    %604 = vmatmul.mubr.f32.gmra.mxu0 %v242
    %v605 = vpop.f32.mrf.mxu0
    %v606 = vadd.f32 0.0, %v605
    %v607 = vpop.f32.mrf.mxu0
    %608 = vmatprep.mubr.f32.mxu0 0.0
    %609 = vmatmul.mubr.f32.gmra.mxu0 %v245
    %v610 = vpop.f32.mrf.mxu0
    %v611 = vadd.f32 0.0, %v610
    %v612 = vpop.f32.mrf.mxu0
    %613 = vmatprep.mubr.f32.mxu0 0.0
    %614 = vmatmul.mubr.f32.gmra.mxu0 %v248
    %v615 = vpop.f32.mrf.mxu0
    %v616 = vadd.f32 0.0, %v615
    %v617 = vpop.f32.mrf.mxu0
    %618 = vmatprep.mubr.f32.mxu0 0.0
    %619 = vmatmul.mubr.f32.gmra.mxu0 %v251
    %v620 = vpop.f32.mrf.mxu0
    %v621 = vadd.f32 0.0, %v620
    %v622 = vpop.f32.mrf.mxu0
    %623 = vmatprep.mubr.f32.mxu0 0.0
    %624 = vmatmul.mubr.f32.gmra.mxu0 %v254
    %v625 = vpop.f32.mrf.mxu0
    %v626 = vadd.f32 0.0, %v625
    %v627 = vpop.f32.mrf.mxu0
    %628 = vmatprep.mubr.f32.mxu0 0.0
    %629 = vmatmul.mubr.f32.gmra.mxu0 %v257
    %v630 = vpop.f32.mrf.mxu0
    %v631 = vadd.f32 0.0, %v630
    %v632 = vpop.f32.mrf.mxu0
    %633 = vmatprep.mubr.f32.mxu0 0.0
    %634 = vmatmul.mubr.f32.gmra.mxu0 %v260
    %v635 = vpop.f32.mrf.mxu0
    %v636 = vadd.f32 0.0, %v635
    %v637 = vpop.f32.mrf.mxu0
    %638 = vmatprep.mubr.f32.mxu0 0.0
    %639 = vmatmul.mubr.f32.gmra.mxu0 %v263
    %v640 = vpop.f32.mrf.mxu0
    %v641 = vadd.f32 0.0, %v640
    %v642 = vpop.f32.mrf.mxu0
    %643 = vmatprep.mubr.f32.mxu0 0.0
    %644 = vmatmul.mubr.f32.gmra.mxu0 %v266
    %v645 = vpop.f32.mrf.mxu0
    %v646 = vadd.f32 0.0, %v645
    %v647 = vpop.f32.mrf.mxu0
    %648 = vmatprep.mubr.f32.mxu0 0.0
    %649 = vmatmul.mubr.f32.gmra.mxu0 %v269
    %v650 = vpop.f32.mrf.mxu0
    %v651 = vadd.f32 0.0, %v650
    %v652 = vpop.f32.mrf.mxu0
    %653 = vmatprep.mubr.f32.mxu0 0.0
    %654 = vmatmul.mubr.f32.gmra.mxu0 %v272
    %v655 = vpop.f32.mrf.mxu0
    %v656 = vadd.f32 0.0, %v655
    %v657 = vpop.f32.mrf.mxu0
    %658 = vmatprep.mubr.f32.mxu0 0.0
    %659 = vmatmul.mubr.f32.gmra.mxu0 %v275
    %v660 = vpop.f32.mrf.mxu0
    %v661 = vadd.f32 0.0, %v660
    %v662 = vpop.f32.mrf.mxu0
    %663 = vmatprep.mubr.f32.mxu0 0.0
    %664 = vmatmul.mubr.f32.gmra.mxu0 %v278
    %v665 = vpop.f32.mrf.mxu0
    %v666 = vadd.f32 0.0, %v665
    %v667 = vpop.f32.mrf.mxu0
    %668 = vdwg.mxu0
    %v669 = vmax.f32 %v351, 0.0
    %v670 = vmax.f32 %v356, 0.0
    %v671 = vmax.f32 %v361, 0.0
    %v672 = vmax.f32 %v366, 0.0
    %v673 = vmax.f32 %v371, 0.0
    %v674 = vmax.f32 %v376, 0.0
    %v675 = vmax.f32 %v381, 0.0
    %v676 = vmax.f32 %v386, 0.0
    %v677 = vmax.f32 %v391, 0.0
    %v678 = vmax.f32 %v396, 0.0
    %v679 = vmax.f32 %v401, 0.0
    %v680 = vmax.f32 %v406, 0.0
    %v681 = vmax.f32 %v411, 0.0
    %v682 = vmax.f32 %v416, 0.0
    %v683 = vmax.f32 %v421, 0.0
    %v684 = vmax.f32 %v426, 0.0
    %v685 = vmax.f32 %v431, 0.0
    %v686 = vmax.f32 %v436, 0.0
    %v687 = vmax.f32 %v441, 0.0
    %v688 = vmax.f32 %v446, 0.0
    %v689 = vmax.f32 %v451, 0.0
    %v690 = vmax.f32 %v456, 0.0
    %v691 = vmax.f32 %v461, 0.0
    %v692 = vmax.f32 %v466, 0.0
    %v693 = vmax.f32 %v471, 0.0
    %v694 = vmax.f32 %v476, 0.0
    %v695 = vmax.f32 %v481, 0.0
    %v696 = vmax.f32 %v486, 0.0
    %v697 = vmax.f32 %v491, 0.0
    %v698 = vmax.f32 %v496, 0.0
    %v699 = vmax.f32 %v501, 0.0
    %v700 = vmax.f32 %v506, 0.0
    %v701 = vmax.f32 %v511, 0.0
    %v702 = vmax.f32 %v516, 0.0
    %v703 = vmax.f32 %v521, 0.0
    %v704 = vmax.f32 %v526, 0.0
    %v705 = vmax.f32 %v531, 0.0
    %v706 = vmax.f32 %v536, 0.0
    %v707 = vmax.f32 %v541, 0.0
    %v708 = vmax.f32 %v546, 0.0
    %v709 = vmax.f32 %v551, 0.0
    %v710 = vmax.f32 %v556, 0.0
    %v711 = vmax.f32 %v561, 0.0
    %v712 = vmax.f32 %v566, 0.0
    %v713 = vmax.f32 %v571, 0.0
    %v714 = vmax.f32 %v576, 0.0
    %v715 = vmax.f32 %v581, 0.0
    %v716 = vmax.f32 %v586, 0.0
    %v717 = vmax.f32 %v591, 0.0
    %v718 = vmax.f32 %v596, 0.0
    %v719 = vmax.f32 %v601, 0.0
    %v720 = vmax.f32 %v606, 0.0
    %v721 = vmax.f32 %v611, 0.0
    %v722 = vmax.f32 %v616, 0.0
    %v723 = vmax.f32 %v621, 0.0
    %v724 = vmax.f32 %v626, 0.0
    %v725 = vmax.f32 %v631, 0.0
    %v726 = vmax.f32 %v636, 0.0
    %v727 = vmax.f32 %v641, 0.0
    %v728 = vmax.f32 %v646, 0.0
    %v729 = vmax.f32 %v651, 0.0
    %v730 = vmax.f32 %v656, 0.0
    %v731 = vmax.f32 %v661, 0.0
    %v732 = vmax.f32 %v666, 0.0
    %v733 = vld [vmem:[%s2] sm:$0xff]
    %v735 = vcombine.high %v733, %v733
    %v737 = vunpack.c.l.s4 1983009808
    %v738 = vunpack.c.0.s8 %v737
    %v739 = vlaneseq
    %v740 = vshrl.u32 %v739, 7
    %v741 = vsub.s32 %v738, %v740
    %v742 = vrot.slane %v733, %v741
    %v744 = vunpack.c.l.s4 1983009808
    %v745 = vunpack.c.0.s8 %v744
    %v746 = vlaneseq
    %v747 = vshrl.u32 %v746, 7
    %v748 = vsub.s32 %v745, %v747
    %v749 = vrot.slane %v735, %v748
    %v750 = vcombine.high %v742, %v742
    %v751 = vcombine.high %v749, %v749
    %756 = vmatprep.subr.mxu0 0.0
    %757 = vmatpush1.msra.mxu0 %v684
    %758 = vmatprep.subr.mxu0 0.0
    %759 = vmatpush1.msra.mxu0 %v683
    %760 = vmatprep.subr.mxu0 0.0
    %761 = vmatpush1.msra.mxu0 %v682
    %762 = vmatprep.subr.mxu0 0.0
    %763 = vmatpush1.msra.mxu0 %v681
    %764 = vmatprep.subr.mxu0 0.0
    %765 = vmatpush1.msra.mxu0 %v680
    %766 = vmatprep.subr.mxu0 0.0
    %767 = vmatpush1.msra.mxu0 %v679
    %768 = vmatprep.subr.mxu0 0.0
    %769 = vmatpush1.msra.mxu0 %v678
    %770 = vmatprep.subr.mxu0 0.0
    %771 = vmatpush1.msra.mxu0 %v677
    %772 = vmatprep.subr.mxu0 0.0
    %773 = vmatpush1.msra.mxu0 %v676
    %774 = vmatprep.subr.mxu0 0.0
    %775 = vmatpush1.msra.mxu0 %v675
    %776 = vmatprep.subr.mxu0 0.0
    %777 = vmatpush1.msra.mxu0 %v674
    %778 = vmatprep.subr.mxu0 0.0
    %779 = vmatpush1.msra.mxu0 %v673
    %780 = vmatprep.subr.mxu0 0.0
    %781 = vmatpush1.msra.mxu0 %v672
    %782 = vmatprep.subr.mxu0 0.0
    %783 = vmatpush1.msra.mxu0 %v671
    %784 = vmatprep.subr.mxu0 0.0
    %785 = vmatpush1.msra.mxu0 %v670
    %786 = vmatprep.subr.mxu0 0.0
    %787 = vmatpush1.msra.mxu0 %v669
    %788 = vmatprep.subr.mxu0 0.0
    %789 = vmatpush2.msra.mxu0 %v700
    %790 = vmatprep.subr.mxu0 0.0
    %791 = vmatpush2.msra.mxu0 %v699
    %792 = vmatprep.subr.mxu0 0.0
    %793 = vmatpush2.msra.mxu0 %v698
    %794 = vmatprep.subr.mxu0 0.0
    %795 = vmatpush2.msra.mxu0 %v697
    %796 = vmatprep.subr.mxu0 0.0
    %797 = vmatpush2.msra.mxu0 %v696
    %798 = vmatprep.subr.mxu0 0.0
    %799 = vmatpush2.msra.mxu0 %v695
    %800 = vmatprep.subr.mxu0 0.0
    %801 = vmatpush2.msra.mxu0 %v694
    %802 = vmatprep.subr.mxu0 0.0
    %803 = vmatpush2.msra.mxu0 %v693
    %804 = vmatprep.subr.mxu0 0.0
    %805 = vmatpush2.msra.mxu0 %v692
    %806 = vmatprep.subr.mxu0 0.0
    %807 = vmatpush2.msra.mxu0 %v691
    %808 = vmatprep.subr.mxu0 0.0
    %809 = vmatpush2.msra.mxu0 %v690
    %810 = vmatprep.subr.mxu0 0.0
    %811 = vmatpush2.msra.mxu0 %v689
    %812 = vmatprep.subr.mxu0 0.0
    %813 = vmatpush2.msra.mxu0 %v688
    %814 = vmatprep.subr.mxu0 0.0
    %815 = vmatpush2.msra.mxu0 %v687
    %816 = vmatprep.subr.mxu0 0.0
    %817 = vmatpush2.msra.mxu0 %v686
    %818 = vmatprep.subr.mxu0 0.0
    %819 = vmatpush2.msra.mxu0 %v685
    %820 = vmatprep.mubr.f32.mxu0 %v750
    %821 = vmatmul.mubr.f32.gmra.mxu0 %v742
    %v822 = vpop.f32.mrf.mxu0
    %v823 = vadd.f32 0.0, %v822
    %v824 = vpop.f32.mrf.mxu0
    %825 = vdwg.mxu0
    %826 = vmatprep.subr.mxu0 0.0
    %827 = vmatpush1.msra.mxu0 %v716
    %828 = vmatprep.subr.mxu0 0.0
    %829 = vmatpush1.msra.mxu0 %v715
    %830 = vmatprep.subr.mxu0 0.0
    %831 = vmatpush1.msra.mxu0 %v714
    %832 = vmatprep.subr.mxu0 0.0
    %833 = vmatpush1.msra.mxu0 %v713
    %834 = vmatprep.subr.mxu0 0.0
    %835 = vmatpush1.msra.mxu0 %v712
    %836 = vmatprep.subr.mxu0 0.0
    %837 = vmatpush1.msra.mxu0 %v711
    %838 = vmatprep.subr.mxu0 0.0
    %839 = vmatpush1.msra.mxu0 %v710
    %840 = vmatprep.subr.mxu0 0.0
    %841 = vmatpush1.msra.mxu0 %v709
    %842 = vmatprep.subr.mxu0 0.0
    %843 = vmatpush1.msra.mxu0 %v708
    %844 = vmatprep.subr.mxu0 0.0
    %845 = vmatpush1.msra.mxu0 %v707
    %846 = vmatprep.subr.mxu0 0.0
    %847 = vmatpush1.msra.mxu0 %v706
    %848 = vmatprep.subr.mxu0 0.0
    %849 = vmatpush1.msra.mxu0 %v705
    %850 = vmatprep.subr.mxu0 0.0
    %851 = vmatpush1.msra.mxu0 %v704
    %852 = vmatprep.subr.mxu0 0.0
    %853 = vmatpush1.msra.mxu0 %v703
    %854 = vmatprep.subr.mxu0 0.0
    %855 = vmatpush1.msra.mxu0 %v702
    %856 = vmatprep.subr.mxu0 0.0
    %857 = vmatpush1.msra.mxu0 %v701
    %858 = vmatprep.subr.mxu0 0.0
    %859 = vmatpush2.msra.mxu0 %v732
    %860 = vmatprep.subr.mxu0 0.0
    %861 = vmatpush2.msra.mxu0 %v731
    %862 = vmatprep.subr.mxu0 0.0
    %863 = vmatpush2.msra.mxu0 %v730
    %864 = vmatprep.subr.mxu0 0.0
    %865 = vmatpush2.msra.mxu0 %v729
    %866 = vmatprep.subr.mxu0 0.0
    %867 = vmatpush2.msra.mxu0 %v728
    %868 = vmatprep.subr.mxu0 0.0
    %869 = vmatpush2.msra.mxu0 %v727
    %870 = vmatprep.subr.mxu0 0.0
    %871 = vmatpush2.msra.mxu0 %v726
    %872 = vmatprep.subr.mxu0 0.0
    %873 = vmatpush2.msra.mxu0 %v725
    %874 = vmatprep.subr.mxu0 0.0
    %875 = vmatpush2.msra.mxu0 %v724
    %876 = vmatprep.subr.mxu0 0.0
    %877 = vmatpush2.msra.mxu0 %v723
    %878 = vmatprep.subr.mxu0 0.0
    %879 = vmatpush2.msra.mxu0 %v722
    %880 = vmatprep.subr.mxu0 0.0
    %881 = vmatpush2.msra.mxu0 %v721
    %882 = vmatprep.subr.mxu0 0.0
    %883 = vmatpush2.msra.mxu0 %v720
    %884 = vmatprep.subr.mxu0 0.0
    %885 = vmatpush2.msra.mxu0 %v719
    %886 = vmatprep.subr.mxu0 0.0
    %887 = vmatpush2.msra.mxu0 %v718
    %888 = vmatprep.subr.mxu0 0.0
    %889 = vmatpush2.msra.mxu0 %v717
    %890 = vmatprep.mubr.f32.mxu0 %v751
    %891 = vmatmul.mubr.f32.gmra.mxu0 %v749
    %v892 = vpop.f32.mrf.mxu0
    %v893 = vadd.f32 %v823, %v892
    %v894 = vpop.f32.mrf.mxu0
    %895 = vdwg.mxu0
    %v896 = vld [vmem:[%s3] sm:$0x1f]
    %v897 = vmul.f32 %v893, %v893
    %vm898 = vcmask 254976
    %v899 = vsel %vm898, %v897, 0.0
    %900 = vadd.xlane.f32.xlu0 %v899
    %v901 = vpop.xlane.xlu0 %900
    %v902 = vmax.f32 %v901, 1e-24
    %v903 = vrsqrt.pop %v902
    %v904 = vmul.f32 %v896, %v896
    %vm905 = vcmask 258048
    %v906 = vsel %vm905, %v904, 0.0
    %907 = vadd.xlane.f32.xlu0 %v906
    %v908 = vpop.xlane.xlu0 %907
    %v909 = vmax.f32 %v908, 1e-24
    %v910 = vrsqrt.pop %v909
    %v911 = vmul.f32 %v893, %v903
    %v912 = vmul.f32 %v896, %v910
    %vm913 = vcmask 261120
    %v915 = vsel %vm913, %v911, 0
    %v918 = vsel %vm913, %v912, 0
    %920 = vmatprep.subr.mxu0 0.0
    %921 = vmatpush1.xpose.msra.mxu0 0.0
    %922 = vmatprep.subr.mxu0 0.0
    %923 = vmatpush1.xpose.msra.mxu0 0.0
    %924 = vmatprep.subr.mxu0 0.0
    %925 = vmatpush1.xpose.msra.mxu0 0.0
    %926 = vmatprep.subr.mxu0 0.0
    %927 = vmatpush1.xpose.msra.mxu0 0.0
    %928 = vmatprep.subr.mxu0 0.0
    %929 = vmatpush1.xpose.msra.mxu0 0.0
    %930 = vmatprep.subr.mxu0 0.0
    %931 = vmatpush1.xpose.msra.mxu0 0.0
    %932 = vmatprep.subr.mxu0 0.0
    %933 = vmatpush1.xpose.msra.mxu0 0.0
    %934 = vmatprep.subr.mxu0 0.0
    %935 = vmatpush1.xpose.msra.mxu0 0.0
    %936 = vmatprep.subr.mxu0 0.0
    %937 = vmatpush1.xpose.msra.mxu0 0.0
    %938 = vmatprep.subr.mxu0 0.0
    %939 = vmatpush1.xpose.msra.mxu0 0.0
    %940 = vmatprep.subr.mxu0 0.0
    %941 = vmatpush1.xpose.msra.mxu0 0.0
    %942 = vmatprep.subr.mxu0 0.0
    %943 = vmatpush1.xpose.msra.mxu0 0.0
    %944 = vmatprep.subr.mxu0 0.0
    %945 = vmatpush1.xpose.msra.mxu0 0.0
    %946 = vmatprep.subr.mxu0 0.0
    %947 = vmatpush1.xpose.msra.mxu0 0.0
    %948 = vmatprep.subr.mxu0 0.0
    %949 = vmatpush1.xpose.msra.mxu0 0.0
    %950 = vmatprep.subr.mxu0 0.0
    %951 = vmatpush1.xpose.msra.mxu0 %v918
    %952 = vmatprep.subr.mxu0 0.0
    %953 = vmatpush2.xpose.msra.mxu0 0.0
    %954 = vmatprep.subr.mxu0 0.0
    %955 = vmatpush2.xpose.msra.mxu0 0.0
    %956 = vmatprep.subr.mxu0 0.0
    %957 = vmatpush2.xpose.msra.mxu0 0.0
    %958 = vmatprep.subr.mxu0 0.0
    %959 = vmatpush2.xpose.msra.mxu0 0.0
    %960 = vmatprep.subr.mxu0 0.0
    %961 = vmatpush2.xpose.msra.mxu0 0.0
    %962 = vmatprep.subr.mxu0 0.0
    %963 = vmatpush2.xpose.msra.mxu0 0.0
    %964 = vmatprep.subr.mxu0 0.0
    %965 = vmatpush2.xpose.msra.mxu0 0.0
    %966 = vmatprep.subr.mxu0 0.0
    %967 = vmatpush2.xpose.msra.mxu0 0.0
    %968 = vmatprep.subr.mxu0 0.0
    %969 = vmatpush2.xpose.msra.mxu0 0.0
    %970 = vmatprep.subr.mxu0 0.0
    %971 = vmatpush2.xpose.msra.mxu0 0.0
    %972 = vmatprep.subr.mxu0 0.0
    %973 = vmatpush2.xpose.msra.mxu0 0.0
    %974 = vmatprep.subr.mxu0 0.0
    %975 = vmatpush2.xpose.msra.mxu0 0.0
    %976 = vmatprep.subr.mxu0 0.0
    %977 = vmatpush2.xpose.msra.mxu0 0.0
    %978 = vmatprep.subr.mxu0 0.0
    %979 = vmatpush2.xpose.msra.mxu0 0.0
    %980 = vmatprep.subr.mxu0 0.0
    %981 = vmatpush2.xpose.msra.mxu0 0.0
    %982 = vmatprep.subr.mxu0 0.0
    %983 = vmatpush2.xpose.msra.mxu0 0.0
    %984 = vmatprep.mubr.f32.mxu0 0.0
    %985 = vmatmul.mubr.f32.gmra.mxu0 %v915
    %v986 = vpop.f32.mrf.mxu0
    %v987 = vadd.f32 0.0, %v986
    %v988 = vpop.f32.mrf.mxu0
    %989 = vdwg.mxu0
    %vm990 = vcmask 33792
    %991 = vst.msk [vmem:[#allocation2] sm:$0x3] %vm990, %v987
    // Predicated region
    $region18: #{prototypical_forward.1} parent=1 // pred_check
      _
    $region19: #{prototypical_forward.1} parent=1 // pred_check_branch
      %993 = sbr.rel (0) target = $region21
    $region20: #{prototypical_forward.1} parent=1 // pred_region
      %s995 = ssub.s32 32, 32
      %996 = vsyncadd [#allocation3], %s995
      %s998 = sshll.u32 [#allocation2], 4
      %s999 = int_to_ptr.vmem [resolvable:$true] %s998
      %1001 = dma.vmem_to_hbm [thread:$0]  %s999, 32, %s4, [#allocation3]
    $region21: #{prototypical_forward.1} parent=1 // pred_fallthru
      _
    // Predicated region
    $region22: #{prototypical_forward.1} parent=1 // pred_check
      _
    $region23: #{prototypical_forward.1} parent=1 // pred_check_branch
      %1003 = sbr.rel (0) target = $region25
    $region24: #{prototypical_forward.1} parent=1 // pred_region
      %1004 = dma.done [#allocation3], 32
    $region25: #{prototypical_forward.1} parent=1 // pred_fallthru
      _
    %1005 = vsyncpa [#allocation3], 1

</llo_original>
